<compile_context>
chip_gen: v6e
topology: v6e:2x2x1
jax: 0.10.0
libtpu: 0.0.40
codegen_flags: <defaults>
</compile_context>

<pallas_src>
import functools

import jax
import jax.numpy as jnp
from jax import lax
from jax.experimental import pallas as pl
from jax.experimental.pallas import tpu as pltpu


def _round_up(n, m):
    return ((n + m - 1) // m) * m


def _pick_tile(n, target):
    """Largest multiple-of-128 divisor of n that is <= target.

    Callers guarantee n is a multiple of 128 (the wrapper pads the node axis),
    so this never degrades to a full-n block."""
    t = (target // 128) * 128
    while t >= 128:
        if n % t == 0:
            return t
        t -= 128
    return n  # unreachable when 128 | n


def _exp_dtype_for_device():
    """bf16 exp on chips with a bf16 EUP (v6e / v7x); f32 on v5e and older."""
    try:
        kind = jax.devices()[0].device_kind.lower()
    except Exception:
        return jnp.float32
    if any(tag in kind for tag in ("v2", "v3", "v4", "v5")):
        return jnp.float32
    return jnp.bfloat16


# ---------------------------------------------------------------------------
# Kernel 1: projection + per-head src/dst attention scores
# ---------------------------------------------------------------------------
def _gat_proj_kernel(x_ref, w_ref, a_ref, xp_ref, sd_ref):
    # x_ref: (TM, Fin)   w_ref: (Fin, H*Fout)   a_ref: (H*Fout, 2*H)
    x = x_ref[...].astype(jnp.bfloat16)
    w = w_ref[...].astype(jnp.bfloat16)
    # bf16 MXU matmul, f32 accumulation.
    xp = jnp.dot(x, w, preferred_element_type=jnp.float32)            # (TM, H*Fout)
    # All heads' [src | dst] scores with one small matmul (block-diag a matrix).
    sd = jnp.dot(xp.astype(jnp.bfloat16), a_ref[...].astype(jnp.bfloat16),
                 preferred_element_type=jnp.float32)                   # (TM, 2*H)
    xp_ref[...] = xp.astype(xp_ref.dtype)   # bf16 activation stream
    # sd is only 2H lanes wide (masked store); accepted because this kernel is
    # O(N) while the attention kernel is O(N^2) -- padding sd to 128 lanes
    # would just add HBM writeback bytes.
    sd_ref[...] = sd


def gat_project(x2d, w, a_packed):
    M, Fin = x2d.shape
    HF = w.shape[1]
    H2 = a_packed.shape[1]
    TM = _pick_tile(M, 1024)   # fat M tile: amortize per-step overhead (mem-bound)
    return pl.pallas_call(
        _gat_proj_kernel,
        out_shape=(jax.ShapeDtypeStruct((M, HF), jnp.bfloat16),
                   jax.ShapeDtypeStruct((M, H2), jnp.float32)),
        grid=(M // TM,),
        in_specs=[
            pl.BlockSpec((TM, Fin), lambda i: (i, 0)),
            pl.BlockSpec((Fin, HF), lambda i: (0, 0)),
            pl.BlockSpec((HF, H2), lambda i: (0, 0)),
        ],
        out_specs=(pl.BlockSpec((TM, HF), lambda i: (i, 0)),
                   pl.BlockSpec((TM, H2), lambda i: (i, 0))),
        compiler_params=pltpu.CompilerParams(
            dimension_semantics=("parallel",)),
    )(x2d, w, a_packed)


# ---------------------------------------------------------------------------
# Kernel 2: flash-style masked attention + aggregation (+ optional ELU)
# ---------------------------------------------------------------------------
def _gat_attn_kernel(xp_ref, src_ref, dstT_ref, adj_ref, out_ref,
                     m_sc, l_sc, acc_sc,
                     *, num_heads, out_features, alpha, apply_elu, exp_dtype):
    # xp_ref:   (1, TK, H*Fout) bf16  projected features of key/value nodes
    # src_ref:  (1, TQ, H) f32        a_src . x_i for query nodes
    # dstT_ref: (1, H, TK) f32        a_dst . x_j for key nodes (head-major)
    # adj_ref:  (1, TQ, TK) int8      adjacency tile
    # out_ref:  (1, TQ, H*Fout)
    # scratch:  m_sc/l_sc (TQ, H) f32, acc_sc (TQ, H*Fout) f32
    ki = pl.program_id(2)

    @pl.when(ki == 0)
    def _():
        m_sc[...] = jnp.full_like(m_sc, -1e30)
        l_sc[...] = jnp.zeros_like(l_sc)
        acc_sc[...] = jnp.zeros_like(acc_sc)

    xp = xp_ref[0]                            # (TK, H*Fout) bf16
    src = src_ref[0]                          # (TQ, H)
    dstT = dstT_ref[0]                        # (H, TK)  lane-contiguous per head
    tk = xp.shape[0]
    # int8 compared directly (no (TQ,TK) i8->f32 convert); mask hoisted out of
    # the head loop; finite -1e9 bias keeps all-masked rows NaN-free.
    bias = jnp.where(adj_ref[0] == 0, jnp.float32(-1e9), jnp.float32(0.0))
    # ones column: softmax denominator comes out of the MXU (p @ 1), replacing
    # a cross-lane XLU lane-sum per head.
    ones_col = jnp.ones((tk, 1), jnp.bfloat16)

    for h in range(num_heads):                # static, small (4 or 1)
        lo = h * out_features
        hi = lo + out_features
        # logits[i, j] = leaky_relu(a_src . x_i + a_dst . x_j) + mask_bias
        # dstT row slice is lane-contiguous -> pure VPU broadcast-add, no XLU.
        logits = src[:, h:h + 1] + dstT[h:h + 1, :]               # (TQ, TK)
        logits = jnp.where(logits > 0, logits, alpha * logits)    # LeakyReLU
        logits = logits + bias

        # Online softmax update for this head.
        m_prev = m_sc[:, h:h + 1]
        m_new = jnp.maximum(m_prev, jnp.max(logits, axis=-1, keepdims=True))
        scale = jnp.exp(m_prev - m_new)
        # bf16 exp on v6e/v7x (bf16 EUP, ~2x transcendental throughput); f32
        # on v5e.  l / acc accumulation stays f32 either way.
        p = jnp.exp((logits - m_new).astype(exp_dtype)).astype(jnp.bfloat16)

        pv = jnp.dot(p, xp[:, lo:hi], preferred_element_type=jnp.float32)
        ps = jnp.dot(p, ones_col, preferred_element_type=jnp.float32)
        l_sc[:, h:h + 1] = scale * l_sc[:, h:h + 1] + ps
        acc_sc[:, lo:hi] = scale * acc_sc[:, lo:hi] + pv
        m_sc[:, h:h + 1] = m_new
        # TODO(synk): nn.Dropout on attention is identity in eval mode; not applied.

    @pl.when(ki == pl.num_programs(2) - 1)
    def _():
        # Vectorized epilogue: one reciprocal over all heads, head->feature
        # expansion via a tiny constant 0/1 MXU matmul, one full-width ELU and
        # a single full-lane store (no per-head concat / per-head reciprocal).
        acc = acc_sc[...]                                       # (TQ, HF)
        inv_l = pl.reciprocal(l_sc[...], approx=False)          # (TQ, H)
        if num_heads > 1:
            hf = acc.shape[1]
            col_head = lax.broadcasted_iota(jnp.int32, (num_heads, hf), 1) \
                // out_features
            row_head = lax.broadcasted_iota(jnp.int32, (num_heads, hf), 0)
            expand = (col_head == row_head).astype(jnp.float32)  # (H, HF) 0/1
            inv_full = jnp.dot(inv_l, expand,
                               preferred_element_type=jnp.float32)
        else:
            inv_full = inv_l                                    # broadcasts
        out = acc * inv_full
        if apply_elu:
            out = jnp.where(out > 0, out, jnp.expm1(out))
        out_ref[0] = out.astype(out_ref.dtype)


def gat_attention(x_proj, src, dstT, adj_i8, *, num_heads, out_features,
                  alpha, apply_elu, out_dtype, exp_dtype):
    B, N, HF = x_proj.shape
    H = num_heads
    # TQ*TK <= 512*512 keeps the compiler-materialized f32 tile temporaries
    # (bias/logits/p, TQ*TK*4 B each) at a few MiB -> safe inside the 32 MiB
    # scoped-VMEM default on every gen (incl. v7x).  N is padded to a multiple
    # of 128 by the wrapper, so _pick_tile always returns a proper tile.
    TQ = _pick_tile(N, 512)
    TK = _pick_tile(N, 512)

    kernel = functools.partial(
        _gat_attn_kernel, num_heads=num_heads, out_features=out_features,
        alpha=alpha, apply_elu=apply_elu, exp_dtype=exp_dtype)

    return pl.pallas_call(
        kernel,
        out_shape=jax.ShapeDtypeStruct((B, N, HF), out_dtype),
        grid=(B, N // TQ, N // TK),
        in_specs=[
            pl.BlockSpec((1, TK, HF), lambda b, qi, ki: (b, ki, 0)),
            pl.BlockSpec((1, TQ, H), lambda b, qi, ki: (b, qi, 0)),
            pl.BlockSpec((1, H, TK), lambda b, qi, ki: (b, 0, ki)),
            pl.BlockSpec((1, TQ, TK), lambda b, qi, ki: (b, qi, ki)),
        ],
        out_specs=pl.BlockSpec((1, TQ, HF), lambda b, qi, ki: (b, qi, 0)),
        scratch_shapes=[
            pltpu.VMEM((TQ, H), jnp.float32),   # running max
            pltpu.VMEM((TQ, H), jnp.float32),   # running denominator
            pltpu.VMEM((TQ, HF), jnp.float32),  # running weighted sum
        ],
        compiler_params=pltpu.CompilerParams(
            dimension_semantics=("parallel", "parallel", "arbitrary")),
    )(x_proj, src, dstT, adj_i8)


# ---------------------------------------------------------------------------
# Layer / model wrappers
# ---------------------------------------------------------------------------
def _pack_attention(att, num_heads, out_features):
    """(H, 2*Fout) attention params -> (H*Fout, 2*H) block-diagonal matrix so
    x_proj @ A yields every head's [src | dst] score with one matmul."""
    a_src = att[:, :out_features]             # (H, Fout)
    a_dst = att[:, out_features:]             # (H, Fout)
    eye = jnp.eye(num_heads, dtype=att.dtype)
    blk_src = (a_src[:, :, None] * eye[:, None, :]).reshape(
        num_heads * out_features, num_heads)
    blk_dst = (a_dst[:, :, None] * eye[:, None, :]).reshape(
        num_heads * out_features, num_heads)
    return jnp.concatenate([blk_src, blk_dst], axis=-1)


def gat_layer(x, adj_i8, w, att, *, num_heads, out_features, alpha=0.2,
              apply_elu=False, out_dtype=jnp.float32, exp_dtype=jnp.float32):
    """One GATLayer forward (concat=True). x: (B,Np,Fin), adj_i8: (B,Np,Np)."""
    B, Np, Fin = x.shape
    HF = num_heads * out_features
    a_packed = _pack_attention(att, num_heads, out_features)

    # Fold B*Np into the projection matmul's M dimension.
    xp, sd = gat_project(x.reshape(B * Np, Fin), w, a_packed)
    xp = xp.reshape(B, Np, HF)
    sd = sd.reshape(B, Np, 2 * num_heads)
    src = sd[:, :, :num_heads]                              # (B, Np, H)
    # dst pre-transposed to (B, H, Np): the attention kernel then reads each
    # head's key scores as a lane-contiguous row (no in-kernel XLU transpose).
    dstT = jnp.transpose(sd[:, :, num_heads:], (0, 2, 1))   # (B, H, Np)

    return gat_attention(xp, src, dstT, adj_i8,
                         num_heads=num_heads, out_features=out_features,
                         alpha=alpha, apply_elu=apply_elu,
                         out_dtype=out_dtype, exp_dtype=exp_dtype)


def init_gat_params(key, in_features, hidden_features, out_features,
                    num_heads=4, num_layers=2):
    """Deterministic synthetic parameters matching GAT.__init__ shapes."""
    assert num_layers >= 2
    layer_dims = [(in_features, hidden_features, num_heads)]
    for _ in range(num_layers - 2):
        layer_dims.append((hidden_features * num_heads, hidden_features, num_heads))
    layer_dims.append((hidden_features * num_heads, out_features, 1))

    params = []
    for (fin, fout, heads) in layer_dims:
        key, k_w, k_a = jax.random.split(key, 3)
        # nn.Linear(fin, heads*fout, bias=False): W stored as (fin, heads*fout)
        w = jax.random.normal(k_w, (fin, heads * fout), jnp.float32) / jnp.sqrt(fin)
        # attention parameter: (heads, 2*fout), xavier-uniform-like scale
        att = jax.random.uniform(k_a, (heads, 2 * fout), jnp.float32,
                                 minval=-0.3, maxval=0.3)
        params.append({"w": w, "att": att, "fout": fout, "heads": heads})
    return params


def gat_forward(x, adj, params, alpha=0.2):
    B, N, _ = x.shape
    # Pad the node axis to a multiple of 128: guarantees proper (>=128-lane)
    # tiles for every N (no full-N VMEM blow-up), padded nodes are fully
    # masked (adj rows/cols zero) and sliced off at the end.
    Npad = max(_round_up(N, 128), 128)
    if Npad != N:
        x = jnp.pad(x, ((0, 0), (0, Npad - N), (0, 0)))
        adj = jnp.pad(adj, ((0, 0), (0, Npad - N), (0, Npad - N)))
    # Adjacency mask as int8 once: zero/nonzero semantics preserved exactly,
    # and the dominant (B, N, N) HBM stream shrinks 4x vs float32.
    adj_i8 = (adj != 0).astype(jnp.int8)
    # TODO(synk): adjacency could be bit-packed to 1 bit/edge for another 8x
    # HBM reduction on large graphs; int8 kept for simplicity.

    exp_dtype = _exp_dtype_for_device()
    n_layers = len(params)
    for idx, p in enumerate(params):
        is_last = idx == n_layers - 1
        x = gat_layer(x, adj_i8, p["w"], p["att"],
                      num_heads=p["heads"], out_features=p["fout"],
                      alpha=alpha, apply_elu=not is_last,
                      # inter-layer activations in bf16 (halves HBM traffic);
                      # final layer output stays f32.
                      out_dtype=jnp.float32 if is_last else jnp.bfloat16,
                      exp_dtype=exp_dtype)
    return x[:, :N, :]


if __name__ == "__main__":
    key = jax.random.PRNGKey(0)
    k_x, k_adj, k_params = jax.random.split(key, 3)

    # Small shapes: batch=2, nodes=16, in_features=8, hidden=8, out=4, heads=4
    B, N = 2, 16
    in_features, hidden_features, out_features = 8, 8, 4
    num_heads, num_layers = 4, 2

    x = jax.random.normal(k_x, (B, N, in_features), jnp.float32)
    # Random symmetric adjacency with self-loops (well-formed graphs, as fed to
    # the PyTorch module).
    adj_rand = jax.random.uniform(k_adj, (B, N, N)) < 0.3
    adj = (adj_rand | jnp.swapaxes(adj_rand, 1, 2) |
           jnp.eye(N, dtype=bool)[None]).astype(jnp.float32)

    params = init_gat_params(k_params, in_features, hidden_features,
                             out_features, num_heads=num_heads,
                             num_layers=num_layers)

    out = gat_forward(x, adj, params)
    out = jax.block_until_ready(out)
    assert out.shape == (B, N, out_features), out.shape
    assert bool(jnp.all(jnp.isfinite(out)))
    print("KERNEL_OK")
</pallas_src>

<mosaic_0001>
module attributes {stable_mosaic.version = 11 : i64} {
  func.func @_gat_proj_kernel(%arg0: i32, %arg1: memref<256x8xf32, #tpu.memory_space<vmem>>, %arg2: memref<8x32xf32, #tpu.memory_space<vmem>>, %arg3: memref<32x8xf32, #tpu.memory_space<vmem>>, %arg4: memref<256x32xbf16, #tpu.memory_space<vmem>>, %arg5: memref<256x8xf32, #tpu.memory_space<vmem>>) attributes {dimension_semantics = [#tpu.dimension_semantics<parallel>], iteration_bounds = array<i64: 1>, scalar_prefetch = 0 : i64, scratch_operands = 0 : i64, tpu.core_type = #tpu.core_type<tc>, window_params = [{transform_indices = @transform_0, window_bounds = array<i64: 256, 8>}, {pipeline_mode = #tpu.pipeline_mode<synchronous>, transform_indices = @transform_1, window_bounds = array<i64: 8, 32>}, {pipeline_mode = #tpu.pipeline_mode<synchronous>, transform_indices = @transform_2, window_bounds = array<i64: 32, 8>}, {transform_indices = @transform_3, window_bounds = array<i64: 256, 32>}, {transform_indices = @transform_4, window_bounds = array<i64: 256, 8>}]} {
    %c0 = arith.constant 0 : index
    %c0_0 = arith.constant 0 : index
    %0 = vector.load %arg1[%c0, %c0_0] : memref<256x8xf32, #tpu.memory_space<vmem>>, vector<256x8xf32>
    %1 = arith.truncf %0 : vector<256x8xf32> to vector<256x8xbf16>
    %c0_1 = arith.constant 0 : index
    %c0_2 = arith.constant 0 : index
    %2 = vector.load %arg2[%c0_1, %c0_2] : memref<8x32xf32, #tpu.memory_space<vmem>>, vector<8x32xf32>
    %3 = arith.truncf %2 : vector<8x32xf32> to vector<8x32xbf16>
    %cst = arith.constant dense<0.000000e+00> : vector<256x32xf32>
    %4 = tpu.matmul %1, %3, %cst {dimension_numbers = #tpu.dot_dimension_numbers<[1], [0], [0], [1], [0, 0, 1, 1], [], []>} : vector<256x8xbf16>, vector<8x32xbf16>, vector<256x32xf32> -> vector<256x32xf32>
    %5 = arith.truncf %4 : vector<256x32xf32> to vector<256x32xbf16>
    %c0_3 = arith.constant 0 : index
    %c0_4 = arith.constant 0 : index
    %6 = vector.load %arg3[%c0_3, %c0_4] : memref<32x8xf32, #tpu.memory_space<vmem>>, vector<32x8xf32>
    %7 = arith.truncf %6 : vector<32x8xf32> to vector<32x8xbf16>
    %cst_5 = arith.constant dense<0.000000e+00> : vector<256x8xf32>
    %8 = tpu.matmul %5, %7, %cst_5 {dimension_numbers = #tpu.dot_dimension_numbers<[1], [0], [0], [1], [0, 0, 1, 1], [], []>} : vector<256x32xbf16>, vector<32x8xbf16>, vector<256x8xf32> -> vector<256x8xf32>
    %9 = arith.truncf %4 : vector<256x32xf32> to vector<256x32xbf16>
    %c0_6 = arith.constant 0 : index
    %c0_7 = arith.constant 0 : index
    %10 = vector.load %arg4[%c0_6, %c0_7] : memref<256x32xbf16, #tpu.memory_space<vmem>>, vector<256x32xbf16>
    tpu.vector_store %arg4[%c0_6, %c0_7], %9 {strides = array<i32>} : memref<256x32xbf16, #tpu.memory_space<vmem>>, vector<256x32xbf16>,
    %c0_8 = arith.constant 0 : index
    %c0_9 = arith.constant 0 : index
    %11 = vector.load %arg5[%c0_8, %c0_9] : memref<256x8xf32, #tpu.memory_space<vmem>>, vector<256x8xf32>
    tpu.vector_store %arg5[%c0_8, %c0_9], %8 {strides = array<i32>} : memref<256x8xf32, #tpu.memory_space<vmem>>, vector<256x8xf32>,
    return
  }
  func.func @transform_0(%arg0: i32) -> (i32, i32) {
    %c0_i32 = arith.constant 0 : i32
    %c0_i32_0 = arith.constant 0 : i32
    return %arg0, %c0_i32 : i32, i32
  }
  func.func @transform_1(%arg0: i32) -> (i32, i32) {
    %c0_i32 = arith.constant 0 : i32
    %c0_i32_0 = arith.constant 0 : i32
    %c0_i32_1 = arith.constant 0 : i32
    return %c0_i32, %c0_i32_0 : i32, i32
  }
  func.func @transform_2(%arg0: i32) -> (i32, i32) {
    %c0_i32 = arith.constant 0 : i32
    %c0_i32_0 = arith.constant 0 : i32
    %c0_i32_1 = arith.constant 0 : i32
    return %c0_i32, %c0_i32_0 : i32, i32
  }
  func.func @transform_3(%arg0: i32) -> (i32, i32) {
    %c0_i32 = arith.constant 0 : i32
    %c0_i32_0 = arith.constant 0 : i32
    return %arg0, %c0_i32 : i32, i32
  }
  func.func @transform_4(%arg0: i32) -> (i32, i32) {
    %c0_i32 = arith.constant 0 : i32
    %c0_i32_0 = arith.constant 0 : i32
    return %arg0, %c0_i32 : i32, i32
  }
}

</mosaic_0001>

<llo_original>
// kernel: tpu_custom_call.1
$region0: #{tpu_custom_call.1}
  #allocation0 [shape = 'u32[]', space=smem, size = 0x4, offset = 0x4, fixed_abs, tag = 'smem constant byte address 0x4 - core index']
  #allocation1 [shape = 'u32[144,128]{1,0:T(1,128)}', space=vmem, size = 0x12000, scoped, tag = 'internal scratch']
  %s0 = inlined_call_operand.vmem [shape: f32[256,8], index: 0, kind: input, shape index: {}]
  %s1 = inlined_call_operand.vmem [shape: f32[8,32], index: 1, kind: input, shape index: {}]
  %s2 = inlined_call_operand.vmem [shape: f32[32,8], index: 2, kind: input, shape index: {}]
  %s3 = inlined_call_operand.vmem [shape: bf16[256,32], index: 3, kind: output, shape index: {0}]
  %s4 = inlined_call_operand.vmem [shape: f32[256,8], index: 4, kind: output, shape index: {1}]
  %5 = xla_tuple %s3, %s4
  %s6 = sld [smem:[#allocation0]]
  $region30: #{tpu_custom_call.1} parent=0
    _
  %s8 = ssub.s32 1, %s6
  %s9 = scalar_select 0, %s8, %s6
  // Predicated region
  $region2: #{tpu_custom_call.1} parent=0 // pred_check
    _
  $region3: #{tpu_custom_call.1} parent=0 // pred_check_branch
    %11 = sbr.rel (0) target = $region5
  $region4: #{tpu_custom_call.1} parent=0 // pred_region
    _
  $region5: #{tpu_custom_call.1} parent=0 // pred_fallthru
    _
  // Predicated region
  $region6: #{tpu_custom_call.1} parent=0 // pred_check
    _
  $region7: #{tpu_custom_call.1} parent=0 // pred_check_branch
    %13 = sbr.rel (0) target = $region9
  $region8: #{tpu_custom_call.1} parent=0 // pred_region
    _
  $region9: #{tpu_custom_call.1} parent=0 // pred_fallthru
    _
  // Predicated region
  $region10: #{tpu_custom_call.1} parent=0 // pred_check
    _
  $region11: #{tpu_custom_call.1} parent=0 // pred_check_branch
    %15 = sbr.rel (0) target = $region13
  $region12: #{tpu_custom_call.1} parent=0 // pred_region
    _
  $region13: #{tpu_custom_call.1} parent=0 // pred_fallthru
    _
  %v17 = vld [vmem:[%s0] sm:$0xff]
  %v18 = vld [vmem:[%s0 + $0x8] sm:$0xff]
  %v19 = vld [vmem:[%s0 + $0x10] sm:$0xff]
  %v20 = vld [vmem:[%s0 + $0x18] sm:$0xff]
  %v21 = vld [vmem:[%s0 + $0x20] sm:$0xff]
  %v22 = vld [vmem:[%s0 + $0x28] sm:$0xff]
  %v23 = vld [vmem:[%s0 + $0x30] sm:$0xff]
  %v24 = vld [vmem:[%s0 + $0x38] sm:$0xff]
  %v25 = vld [vmem:[%s0 + $0x40] sm:$0xff]
  %v26 = vld [vmem:[%s0 + $0x48] sm:$0xff]
  %v27 = vld [vmem:[%s0 + $0x50] sm:$0xff]
  %v28 = vld [vmem:[%s0 + $0x58] sm:$0xff]
  %v29 = vld [vmem:[%s0 + $0x60] sm:$0xff]
  %v30 = vld [vmem:[%s0 + $0x68] sm:$0xff]
  %v31 = vld [vmem:[%s0 + $0x70] sm:$0xff]
  %v32 = vld [vmem:[%s0 + $0x78] sm:$0xff]
  %v33 = vld [vmem:[%s0 + $0x80] sm:$0xff]
  %v34 = vld [vmem:[%s0 + $0x88] sm:$0xff]
  %v35 = vld [vmem:[%s0 + $0x90] sm:$0xff]
  %v36 = vld [vmem:[%s0 + $0x98] sm:$0xff]
  %v37 = vld [vmem:[%s0 + $0xa0] sm:$0xff]
  %v38 = vld [vmem:[%s0 + $0xa8] sm:$0xff]
  %v39 = vld [vmem:[%s0 + $0xb0] sm:$0xff]
  %v40 = vld [vmem:[%s0 + $0xb8] sm:$0xff]
  %v41 = vld [vmem:[%s0 + $0xc0] sm:$0xff]
  %v42 = vld [vmem:[%s0 + $0xc8] sm:$0xff]
  %v43 = vld [vmem:[%s0 + $0xd0] sm:$0xff]
  %v44 = vld [vmem:[%s0 + $0xd8] sm:$0xff]
  %v45 = vld [vmem:[%s0 + $0xe0] sm:$0xff]
  %v46 = vld [vmem:[%s0 + $0xe8] sm:$0xff]
  %v47 = vld [vmem:[%s0 + $0xf0] sm:$0xff]
  %v48 = vld [vmem:[%s0 + $0xf8] sm:$0xff]
  %v49 = vpack.c.bf16 %v18, %v17
  %v50 = vpack.c.bf16 %v20, %v19
  %v51 = vpack.c.bf16 %v22, %v21
  %v52 = vpack.c.bf16 %v24, %v23
  %v53 = vpack.c.bf16 %v26, %v25
  %v54 = vpack.c.bf16 %v28, %v27
  %v55 = vpack.c.bf16 %v30, %v29
  %v56 = vpack.c.bf16 %v32, %v31
  %v57 = vpack.c.bf16 %v34, %v33
  %v58 = vpack.c.bf16 %v36, %v35
  %v59 = vpack.c.bf16 %v38, %v37
  %v60 = vpack.c.bf16 %v40, %v39
  %v61 = vpack.c.bf16 %v42, %v41
  %v62 = vpack.c.bf16 %v44, %v43
  %v63 = vpack.c.bf16 %v46, %v45
  %v64 = vpack.c.bf16 %v48, %v47
  %v65 = vld [vmem:[%s1] sm:$0xff]
  %v66 = vpack.c.bf16 %v65, %v65
  %vm67 = vcmask 64512
  %v69 = vsel %vm67, %v49, 0
  %v72 = vsel %vm67, %v50, 0
  %v75 = vsel %vm67, %v51, 0
  %v78 = vsel %vm67, %v52, 0
  %v81 = vsel %vm67, %v53, 0
  %v84 = vsel %vm67, %v54, 0
  %v87 = vsel %vm67, %v55, 0
  %v90 = vsel %vm67, %v56, 0
  %v93 = vsel %vm67, %v57, 0
  %v96 = vsel %vm67, %v58, 0
  %v99 = vsel %vm67, %v59, 0
  %v102 = vsel %vm67, %v60, 0
  %v105 = vsel %vm67, %v61, 0
  %v108 = vsel %vm67, %v62, 0
  %v111 = vsel %vm67, %v63, 0
  %v114 = vsel %vm67, %v64, 0
  %vm116 = vcmask 1043456
  %v118 = vsel %vm116, %v66, 0
  %120 = vmatprep.subr.bf16.mxu0 0
  %121 = vmatpush1.bf16.msra.mxu0 0
  %122 = vmatprep.subr.bf16.mxu0 0
  %123 = vmatpush1.bf16.msra.mxu0 0
  %124 = vmatprep.subr.bf16.mxu0 0
  %125 = vmatpush1.bf16.msra.mxu0 0
  %126 = vmatprep.subr.bf16.mxu0 0
  %127 = vmatpush1.bf16.msra.mxu0 0
  %128 = vmatprep.subr.bf16.mxu0 0
  %129 = vmatpush1.bf16.msra.mxu0 0
  %130 = vmatprep.subr.bf16.mxu0 0
  %131 = vmatpush1.bf16.msra.mxu0 0
  %132 = vmatprep.subr.bf16.mxu0 0
  %133 = vmatpush1.bf16.msra.mxu0 0
  %134 = vmatprep.subr.bf16.mxu0 0
  %135 = vmatpush1.bf16.msra.mxu0 %v118
  %136 = vmatprep.subr.bf16.mxu0 0
  %137 = vmatpush2.bf16.msra.mxu0 0
  %138 = vmatprep.subr.bf16.mxu0 0
  %139 = vmatpush2.bf16.msra.mxu0 0
  %140 = vmatprep.subr.bf16.mxu0 0
  %141 = vmatpush2.bf16.msra.mxu0 0
  %142 = vmatprep.subr.bf16.mxu0 0
  %143 = vmatpush2.bf16.msra.mxu0 0
  %144 = vmatprep.subr.bf16.mxu0 0
  %145 = vmatpush2.bf16.msra.mxu0 0
  %146 = vmatprep.subr.bf16.mxu0 0
  %147 = vmatpush2.bf16.msra.mxu0 0
  %148 = vmatprep.subr.bf16.mxu0 0
  %149 = vmatpush2.bf16.msra.mxu0 0
  %150 = vmatprep.subr.bf16.mxu0 0
  %151 = vmatpush2.bf16.msra.mxu0 0
  %152 = vmatprep.mubr.bf16.mxu0 0
  %153 = vmatmul.mubr.bf16.gmra.mxu0 %v69
  %v154 = vpop.f32.mrf.mxu0
  %v155 = vadd.f32 0.0, %v154
  %v156 = vpop.f32.mrf.mxu0
  %v157 = vpop.f32.mrf.mxu0
  %v158 = vadd.f32 0.0, %v157
  %v159 = vpop.f32.mrf.mxu0
  %160 = vmatprep.mubr.bf16.mxu0 0
  %161 = vmatmul.mubr.bf16.gmra.mxu0 %v72
  %v162 = vpop.f32.mrf.mxu0
  %v163 = vadd.f32 0.0, %v162
  %v164 = vpop.f32.mrf.mxu0
  %v165 = vpop.f32.mrf.mxu0
  %v166 = vadd.f32 0.0, %v165
  %v167 = vpop.f32.mrf.mxu0
  %168 = vmatprep.mubr.bf16.mxu0 0
  %169 = vmatmul.mubr.bf16.gmra.mxu0 %v75
  %v170 = vpop.f32.mrf.mxu0
  %v171 = vadd.f32 0.0, %v170
  %v172 = vpop.f32.mrf.mxu0
  %v173 = vpop.f32.mrf.mxu0
  %v174 = vadd.f32 0.0, %v173
  %v175 = vpop.f32.mrf.mxu0
  %176 = vmatprep.mubr.bf16.mxu0 0
  %177 = vmatmul.mubr.bf16.gmra.mxu0 %v78
  %v178 = vpop.f32.mrf.mxu0
  %v179 = vadd.f32 0.0, %v178
  %v180 = vpop.f32.mrf.mxu0
  %v181 = vpop.f32.mrf.mxu0
  %v182 = vadd.f32 0.0, %v181
  %v183 = vpop.f32.mrf.mxu0
  %184 = vmatprep.mubr.bf16.mxu0 0
  %185 = vmatmul.mubr.bf16.gmra.mxu0 %v81
  %v186 = vpop.f32.mrf.mxu0
  %v187 = vadd.f32 0.0, %v186
  %v188 = vpop.f32.mrf.mxu0
  %v189 = vpop.f32.mrf.mxu0
  %v190 = vadd.f32 0.0, %v189
  %v191 = vpop.f32.mrf.mxu0
  %192 = vmatprep.mubr.bf16.mxu0 0
  %193 = vmatmul.mubr.bf16.gmra.mxu0 %v84
  %v194 = vpop.f32.mrf.mxu0
  %v195 = vadd.f32 0.0, %v194
  %v196 = vpop.f32.mrf.mxu0
  %v197 = vpop.f32.mrf.mxu0
  %v198 = vadd.f32 0.0, %v197
  %v199 = vpop.f32.mrf.mxu0
  %200 = vmatprep.mubr.bf16.mxu0 0
  %201 = vmatmul.mubr.bf16.gmra.mxu0 %v87
  %v202 = vpop.f32.mrf.mxu0
  %v203 = vadd.f32 0.0, %v202
  %v204 = vpop.f32.mrf.mxu0
  %v205 = vpop.f32.mrf.mxu0
  %v206 = vadd.f32 0.0, %v205
  %v207 = vpop.f32.mrf.mxu0
  %208 = vmatprep.mubr.bf16.mxu0 0
  %209 = vmatmul.mubr.bf16.gmra.mxu0 %v90
  %v210 = vpop.f32.mrf.mxu0
  %v211 = vadd.f32 0.0, %v210
  %v212 = vpop.f32.mrf.mxu0
  %v213 = vpop.f32.mrf.mxu0
  %v214 = vadd.f32 0.0, %v213
  %v215 = vpop.f32.mrf.mxu0
  %216 = vmatprep.mubr.bf16.mxu0 0
  %217 = vmatmul.mubr.bf16.gmra.mxu0 %v93
  %v218 = vpop.f32.mrf.mxu0
  %v219 = vadd.f32 0.0, %v218
  %v220 = vpop.f32.mrf.mxu0
  %v221 = vpop.f32.mrf.mxu0
  %v222 = vadd.f32 0.0, %v221
  %v223 = vpop.f32.mrf.mxu0
  %224 = vmatprep.mubr.bf16.mxu0 0
  %225 = vmatmul.mubr.bf16.gmra.mxu0 %v96
  %v226 = vpop.f32.mrf.mxu0
  %v227 = vadd.f32 0.0, %v226
  %v228 = vpop.f32.mrf.mxu0
  %v229 = vpop.f32.mrf.mxu0
  %v230 = vadd.f32 0.0, %v229
  %v231 = vpop.f32.mrf.mxu0
  %232 = vmatprep.mubr.bf16.mxu0 0
  %233 = vmatmul.mubr.bf16.gmra.mxu0 %v99
  %v234 = vpop.f32.mrf.mxu0
  %v235 = vadd.f32 0.0, %v234
  %v236 = vpop.f32.mrf.mxu0
  %v237 = vpop.f32.mrf.mxu0
  %v238 = vadd.f32 0.0, %v237
  %v239 = vpop.f32.mrf.mxu0
  %240 = vmatprep.mubr.bf16.mxu0 0
  %241 = vmatmul.mubr.bf16.gmra.mxu0 %v102
  %v242 = vpop.f32.mrf.mxu0
  %v243 = vadd.f32 0.0, %v242
  %v244 = vpop.f32.mrf.mxu0
  %v245 = vpop.f32.mrf.mxu0
  %v246 = vadd.f32 0.0, %v245
  %v247 = vpop.f32.mrf.mxu0
  %248 = vmatprep.mubr.bf16.mxu0 0
  %249 = vmatmul.mubr.bf16.gmra.mxu0 %v105
  %v250 = vpop.f32.mrf.mxu0
  %v251 = vadd.f32 0.0, %v250
  %v252 = vpop.f32.mrf.mxu0
  %v253 = vpop.f32.mrf.mxu0
  %v254 = vadd.f32 0.0, %v253
  %v255 = vpop.f32.mrf.mxu0
  %256 = vmatprep.mubr.bf16.mxu0 0
  %257 = vmatmul.mubr.bf16.gmra.mxu0 %v108
  %v258 = vpop.f32.mrf.mxu0
  %v259 = vadd.f32 0.0, %v258
  %v260 = vpop.f32.mrf.mxu0
  %v261 = vpop.f32.mrf.mxu0
  %v262 = vadd.f32 0.0, %v261
  %v263 = vpop.f32.mrf.mxu0
  %264 = vmatprep.mubr.bf16.mxu0 0
  %265 = vmatmul.mubr.bf16.gmra.mxu0 %v111
  %v266 = vpop.f32.mrf.mxu0
  %v267 = vadd.f32 0.0, %v266
  %v268 = vpop.f32.mrf.mxu0
  %v269 = vpop.f32.mrf.mxu0
  %v270 = vadd.f32 0.0, %v269
  %v271 = vpop.f32.mrf.mxu0
  %272 = vmatprep.mubr.bf16.mxu0 0
  %273 = vmatmul.mubr.bf16.gmra.mxu0 %v114
  %v274 = vpop.f32.mrf.mxu0
  %v275 = vadd.f32 0.0, %v274
  %v276 = vpop.f32.mrf.mxu0
  %v277 = vpop.f32.mrf.mxu0
  %v278 = vadd.f32 0.0, %v277
  %v279 = vpop.f32.mrf.mxu0
  %280 = vdwg.mxu0
  %v281 = vpack.c.bf16 %v158, %v155
  %v282 = vpack.c.bf16 %v166, %v163
  %v283 = vpack.c.bf16 %v174, %v171
  %v284 = vpack.c.bf16 %v182, %v179
  %v285 = vpack.c.bf16 %v190, %v187
  %v286 = vpack.c.bf16 %v198, %v195
  %v287 = vpack.c.bf16 %v206, %v203
  %v288 = vpack.c.bf16 %v214, %v211
  %v289 = vpack.c.bf16 %v222, %v219
  %v290 = vpack.c.bf16 %v230, %v227
  %v291 = vpack.c.bf16 %v238, %v235
  %v292 = vpack.c.bf16 %v246, %v243
  %v293 = vpack.c.bf16 %v254, %v251
  %v294 = vpack.c.bf16 %v262, %v259
  %v295 = vpack.c.bf16 %v270, %v267
  %v296 = vpack.c.bf16 %v278, %v275
  %v297 = vld [vmem:[%s2] sm:$0xff]
  %v298 = vld [vmem:[%s2 + $0x8] sm:$0xff]
  %v299 = vld [vmem:[%s2 + $0x10] sm:$0xff]
  %v300 = vld [vmem:[%s2 + $0x18] sm:$0xff]
  %v301 = vpack.c.bf16 %v298, %v297
  %v302 = vpack.c.bf16 %v300, %v299
  %vm303 = vcmask 261120
  %v305 = vsel %vm303, %v281, 0
  %v308 = vsel %vm303, %v282, 0
  %v311 = vsel %vm303, %v283, 0
  %v314 = vsel %vm303, %v284, 0
  %v317 = vsel %vm303, %v285, 0
  %v320 = vsel %vm303, %v286, 0
  %v323 = vsel %vm303, %v287, 0
  %v326 = vsel %vm303, %v288, 0
  %v329 = vsel %vm303, %v289, 0
  %v332 = vsel %vm303, %v290, 0
  %v335 = vsel %vm303, %v291, 0
  %v338 = vsel %vm303, %v292, 0
  %v341 = vsel %vm303, %v293, 0
  %v344 = vsel %vm303, %v294, 0
  %v347 = vsel %vm303, %v295, 0
  %v350 = vsel %vm303, %v296, 0
  %352 = vmatprep.subr.bf16.mxu0 0
  %353 = vmatpush1.bf16.msra.mxu0 0
  %354 = vmatprep.subr.bf16.mxu0 0
  %355 = vmatpush1.bf16.msra.mxu0 0
  %356 = vmatprep.subr.bf16.mxu0 0
  %357 = vmatpush1.bf16.msra.mxu0 0
  %358 = vmatprep.subr.bf16.mxu0 0
  %359 = vmatpush1.bf16.msra.mxu0 0
  %360 = vmatprep.subr.bf16.mxu0 0
  %361 = vmatpush1.bf16.msra.mxu0 0
  %362 = vmatprep.subr.bf16.mxu0 0
  %363 = vmatpush1.bf16.msra.mxu0 0
  %364 = vmatprep.subr.bf16.mxu0 0
  %365 = vmatpush1.bf16.msra.mxu0 %v302
  %366 = vmatprep.subr.bf16.mxu0 0
  %367 = vmatpush1.bf16.msra.mxu0 %v301
  %368 = vmatprep.subr.bf16.mxu0 0
  %369 = vmatpush2.bf16.msra.mxu0 0
  %370 = vmatprep.subr.bf16.mxu0 0
  %371 = vmatpush2.bf16.msra.mxu0 0
  %372 = vmatprep.subr.bf16.mxu0 0
  %373 = vmatpush2.bf16.msra.mxu0 0
  %374 = vmatprep.subr.bf16.mxu0 0
  %375 = vmatpush2.bf16.msra.mxu0 0
  %376 = vmatprep.subr.bf16.mxu0 0
  %377 = vmatpush2.bf16.msra.mxu0 0
  %378 = vmatprep.subr.bf16.mxu0 0
  %379 = vmatpush2.bf16.msra.mxu0 0
  %380 = vmatprep.subr.bf16.mxu0 0
  %381 = vmatpush2.bf16.msra.mxu0 0
  %382 = vmatprep.subr.bf16.mxu0 0
  %383 = vmatpush2.bf16.msra.mxu0 0
  %384 = vmatprep.mubr.bf16.mxu0 0
  %385 = vmatmul.mubr.bf16.gmra.mxu0 %v305
  %v386 = vpop.f32.mrf.mxu0
  %v387 = vadd.f32 0.0, %v386
  %v388 = vpop.f32.mrf.mxu0
  %v389 = vpop.f32.mrf.mxu0
  %v390 = vadd.f32 0.0, %v389
  %v391 = vpop.f32.mrf.mxu0
  %392 = vmatprep.mubr.bf16.mxu0 0
  %393 = vmatmul.mubr.bf16.gmra.mxu0 %v308
  %v394 = vpop.f32.mrf.mxu0
  %v395 = vadd.f32 0.0, %v394
  %v396 = vpop.f32.mrf.mxu0
  %v397 = vpop.f32.mrf.mxu0
  %v398 = vadd.f32 0.0, %v397
  %v399 = vpop.f32.mrf.mxu0
  %400 = vmatprep.mubr.bf16.mxu0 0
  %401 = vmatmul.mubr.bf16.gmra.mxu0 %v311
  %v402 = vpop.f32.mrf.mxu0
  %v403 = vadd.f32 0.0, %v402
  %v404 = vpop.f32.mrf.mxu0
  %v405 = vpop.f32.mrf.mxu0
  %v406 = vadd.f32 0.0, %v405
  %v407 = vpop.f32.mrf.mxu0
  %408 = vmatprep.mubr.bf16.mxu0 0
  %409 = vmatmul.mubr.bf16.gmra.mxu0 %v314
  %v410 = vpop.f32.mrf.mxu0
  %v411 = vadd.f32 0.0, %v410
  %v412 = vpop.f32.mrf.mxu0
  %v413 = vpop.f32.mrf.mxu0
  %v414 = vadd.f32 0.0, %v413
  %v415 = vpop.f32.mrf.mxu0
  %416 = vmatprep.mubr.bf16.mxu0 0
  %417 = vmatmul.mubr.bf16.gmra.mxu0 %v317
  %v418 = vpop.f32.mrf.mxu0
  %v419 = vadd.f32 0.0, %v418
  %v420 = vpop.f32.mrf.mxu0
  %v421 = vpop.f32.mrf.mxu0
  %v422 = vadd.f32 0.0, %v421
  %v423 = vpop.f32.mrf.mxu0
  %424 = vmatprep.mubr.bf16.mxu0 0
  %425 = vmatmul.mubr.bf16.gmra.mxu0 %v320
  %v426 = vpop.f32.mrf.mxu0
  %v427 = vadd.f32 0.0, %v426
  %v428 = vpop.f32.mrf.mxu0
  %v429 = vpop.f32.mrf.mxu0
  %v430 = vadd.f32 0.0, %v429
  %v431 = vpop.f32.mrf.mxu0
  %432 = vmatprep.mubr.bf16.mxu0 0
  %433 = vmatmul.mubr.bf16.gmra.mxu0 %v323
  %v434 = vpop.f32.mrf.mxu0
  %v435 = vadd.f32 0.0, %v434
  %v436 = vpop.f32.mrf.mxu0
  %v437 = vpop.f32.mrf.mxu0
  %v438 = vadd.f32 0.0, %v437
  %v439 = vpop.f32.mrf.mxu0
  %440 = vmatprep.mubr.bf16.mxu0 0
  %441 = vmatmul.mubr.bf16.gmra.mxu0 %v326
  %v442 = vpop.f32.mrf.mxu0
  %v443 = vadd.f32 0.0, %v442
  %v444 = vpop.f32.mrf.mxu0
  %v445 = vpop.f32.mrf.mxu0
  %v446 = vadd.f32 0.0, %v445
  %v447 = vpop.f32.mrf.mxu0
  %448 = vmatprep.mubr.bf16.mxu0 0
  %449 = vmatmul.mubr.bf16.gmra.mxu0 %v329
  %v450 = vpop.f32.mrf.mxu0
  %v451 = vadd.f32 0.0, %v450
  %v452 = vpop.f32.mrf.mxu0
  %v453 = vpop.f32.mrf.mxu0
  %v454 = vadd.f32 0.0, %v453
  %v455 = vpop.f32.mrf.mxu0
  %456 = vmatprep.mubr.bf16.mxu0 0
  %457 = vmatmul.mubr.bf16.gmra.mxu0 %v332
  %v458 = vpop.f32.mrf.mxu0
  %v459 = vadd.f32 0.0, %v458
  %v460 = vpop.f32.mrf.mxu0
  %v461 = vpop.f32.mrf.mxu0
  %v462 = vadd.f32 0.0, %v461
  %v463 = vpop.f32.mrf.mxu0
  %464 = vmatprep.mubr.bf16.mxu0 0
  %465 = vmatmul.mubr.bf16.gmra.mxu0 %v335
  %v466 = vpop.f32.mrf.mxu0
  %v467 = vadd.f32 0.0, %v466
  %v468 = vpop.f32.mrf.mxu0
  %v469 = vpop.f32.mrf.mxu0
  %v470 = vadd.f32 0.0, %v469
  %v471 = vpop.f32.mrf.mxu0
  %472 = vmatprep.mubr.bf16.mxu0 0
  %473 = vmatmul.mubr.bf16.gmra.mxu0 %v338
  %v474 = vpop.f32.mrf.mxu0
  %v475 = vadd.f32 0.0, %v474
  %v476 = vpop.f32.mrf.mxu0
  %v477 = vpop.f32.mrf.mxu0
  %v478 = vadd.f32 0.0, %v477
  %v479 = vpop.f32.mrf.mxu0
  %480 = vmatprep.mubr.bf16.mxu0 0
  %481 = vmatmul.mubr.bf16.gmra.mxu0 %v341
  %v482 = vpop.f32.mrf.mxu0
  %v483 = vadd.f32 0.0, %v482
  %v484 = vpop.f32.mrf.mxu0
  %v485 = vpop.f32.mrf.mxu0
  %v486 = vadd.f32 0.0, %v485
  %v487 = vpop.f32.mrf.mxu0
  %488 = vmatprep.mubr.bf16.mxu0 0
  %489 = vmatmul.mubr.bf16.gmra.mxu0 %v344
  %v490 = vpop.f32.mrf.mxu0
  %v491 = vadd.f32 0.0, %v490
  %v492 = vpop.f32.mrf.mxu0
  %v493 = vpop.f32.mrf.mxu0
  %v494 = vadd.f32 0.0, %v493
  %v495 = vpop.f32.mrf.mxu0
  %496 = vmatprep.mubr.bf16.mxu0 0
  %497 = vmatmul.mubr.bf16.gmra.mxu0 %v347
  %v498 = vpop.f32.mrf.mxu0
  %v499 = vadd.f32 0.0, %v498
  %v500 = vpop.f32.mrf.mxu0
  %v501 = vpop.f32.mrf.mxu0
  %v502 = vadd.f32 0.0, %v501
  %v503 = vpop.f32.mrf.mxu0
  %504 = vmatprep.mubr.bf16.mxu0 0
  %505 = vmatmul.mubr.bf16.gmra.mxu0 %v350
  %v506 = vpop.f32.mrf.mxu0
  %v507 = vadd.f32 0.0, %v506
  %v508 = vpop.f32.mrf.mxu0
  %v509 = vpop.f32.mrf.mxu0
  %v510 = vadd.f32 0.0, %v509
  %v511 = vpop.f32.mrf.mxu0
  %512 = vdwg.mxu0
  %v529 = vunpack.c.l.b16 %v281
  %v530 = vunpack.c.h.b16 %v281
  %v531 = vunpack.c.l.b16 %v282
  %v532 = vunpack.c.h.b16 %v282
  %v533 = vunpack.c.l.b16 %v283
  %v534 = vunpack.c.h.b16 %v283
  %v535 = vunpack.c.l.b16 %v284
  %v536 = vunpack.c.h.b16 %v284
  %v537 = vunpack.c.l.b16 %v285
  %v538 = vunpack.c.h.b16 %v285
  %v539 = vunpack.c.l.b16 %v286
  %v540 = vunpack.c.h.b16 %v286
  %v541 = vunpack.c.l.b16 %v287
  %v542 = vunpack.c.h.b16 %v287
  %v543 = vunpack.c.l.b16 %v288
  %v544 = vunpack.c.h.b16 %v288
  %v545 = vunpack.c.l.b16 %v289
  %v546 = vunpack.c.h.b16 %v289
  %v547 = vunpack.c.l.b16 %v290
  %v548 = vunpack.c.h.b16 %v290
  %v549 = vunpack.c.l.b16 %v291
  %v550 = vunpack.c.h.b16 %v291
  %v551 = vunpack.c.l.b16 %v292
  %v552 = vunpack.c.h.b16 %v292
  %v553 = vunpack.c.l.b16 %v293
  %v554 = vunpack.c.h.b16 %v293
  %v555 = vunpack.c.l.b16 %v294
  %v556 = vunpack.c.h.b16 %v294
  %v557 = vunpack.c.l.b16 %v295
  %v558 = vunpack.c.h.b16 %v295
  %v559 = vunpack.c.l.b16 %v296
  %v560 = vunpack.c.h.b16 %v296
  %v561 = vpack.c.b16 %v529, %v529
  %v562 = vpack.c.b16 %v530, %v530
  %v563 = vpack.c.b16 %v531, %v531
  %v564 = vpack.c.b16 %v532, %v532
  %v565 = vpack.c.b16 %v533, %v533
  %v566 = vpack.c.b16 %v534, %v534
  %v567 = vpack.c.b16 %v535, %v535
  %v568 = vpack.c.b16 %v536, %v536
  %v569 = vpack.c.b16 %v537, %v537
  %v570 = vpack.c.b16 %v538, %v538
  %v571 = vpack.c.b16 %v539, %v539
  %v572 = vpack.c.b16 %v540, %v540
  %v573 = vpack.c.b16 %v541, %v541
  %v574 = vpack.c.b16 %v542, %v542
  %v575 = vpack.c.b16 %v543, %v543
  %v576 = vpack.c.b16 %v544, %v544
  %v577 = vpack.c.b16 %v545, %v545
  %v578 = vpack.c.b16 %v546, %v546
  %v579 = vpack.c.b16 %v547, %v547
  %v580 = vpack.c.b16 %v548, %v548
  %v581 = vpack.c.b16 %v549, %v549
  %v582 = vpack.c.b16 %v550, %v550
  %v583 = vpack.c.b16 %v551, %v551
  %v584 = vpack.c.b16 %v552, %v552
  %v585 = vpack.c.b16 %v553, %v553
  %v586 = vpack.c.b16 %v554, %v554
  %v587 = vpack.c.b16 %v555, %v555
  %v588 = vpack.c.b16 %v556, %v556
  %v589 = vpack.c.b16 %v557, %v557
  %v590 = vpack.c.b16 %v558, %v558
  %v591 = vpack.c.b16 %v559, %v559
  %v592 = vpack.c.b16 %v560, %v560
  %vm625 = vcmask 257024
  %626 = vst.msk [vmem:[%s3] sm:$0xf] %vm625, %v561
  %627 = vst.msk [vmem:[%s3 + $0x4] sm:$0xf] %vm625, %v562
  %628 = vst.msk [vmem:[%s3 + $0x8] sm:$0xf] %vm625, %v563
  %629 = vst.msk [vmem:[%s3 + $0xc] sm:$0xf] %vm625, %v564
  %630 = vst.msk [vmem:[%s3 + $0x10] sm:$0xf] %vm625, %v565
  %631 = vst.msk [vmem:[%s3 + $0x14] sm:$0xf] %vm625, %v566
  %632 = vst.msk [vmem:[%s3 + $0x18] sm:$0xf] %vm625, %v567
  %633 = vst.msk [vmem:[%s3 + $0x1c] sm:$0xf] %vm625, %v568
  %634 = vst.msk [vmem:[%s3 + $0x20] sm:$0xf] %vm625, %v569
  %635 = vst.msk [vmem:[%s3 + $0x24] sm:$0xf] %vm625, %v570
  %636 = vst.msk [vmem:[%s3 + $0x28] sm:$0xf] %vm625, %v571
  %637 = vst.msk [vmem:[%s3 + $0x2c] sm:$0xf] %vm625, %v572
  %638 = vst.msk [vmem:[%s3 + $0x30] sm:$0xf] %vm625, %v573
  %639 = vst.msk [vmem:[%s3 + $0x34] sm:$0xf] %vm625, %v574
  %640 = vst.msk [vmem:[%s3 + $0x38] sm:$0xf] %vm625, %v575
  %641 = vst.msk [vmem:[%s3 + $0x3c] sm:$0xf] %vm625, %v576
  %642 = vst.msk [vmem:[%s3 + $0x40] sm:$0xf] %vm625, %v577
  %643 = vst.msk [vmem:[%s3 + $0x44] sm:$0xf] %vm625, %v578
  %644 = vst.msk [vmem:[%s3 + $0x48] sm:$0xf] %vm625, %v579
  %645 = vst.msk [vmem:[%s3 + $0x4c] sm:$0xf] %vm625, %v580
  %646 = vst.msk [vmem:[%s3 + $0x50] sm:$0xf] %vm625, %v581
  %647 = vst.msk [vmem:[%s3 + $0x54] sm:$0xf] %vm625, %v582
  %648 = vst.msk [vmem:[%s3 + $0x58] sm:$0xf] %vm625, %v583
  %649 = vst.msk [vmem:[%s3 + $0x5c] sm:$0xf] %vm625, %v584
  %650 = vst.msk [vmem:[%s3 + $0x60] sm:$0xf] %vm625, %v585
  %651 = vst.msk [vmem:[%s3 + $0x64] sm:$0xf] %vm625, %v586
  %652 = vst.msk [vmem:[%s3 + $0x68] sm:$0xf] %vm625, %v587
  %653 = vst.msk [vmem:[%s3 + $0x6c] sm:$0xf] %vm625, %v588
  %654 = vst.msk [vmem:[%s3 + $0x70] sm:$0xf] %vm625, %v589
  %655 = vst.msk [vmem:[%s3 + $0x74] sm:$0xf] %vm625, %v590
  %656 = vst.msk [vmem:[%s3 + $0x78] sm:$0xf] %vm625, %v591
  %657 = vst.msk [vmem:[%s3 + $0x7c] sm:$0xf] %vm625, %v592
  %658 = vst.msk [vmem:[%s4] sm:$0xff] %vm67, %v387
  %659 = vst.msk [vmem:[%s4 + $0x8] sm:$0xff] %vm67, %v390
  %660 = vst.msk [vmem:[%s4 + $0x10] sm:$0xff] %vm67, %v395
  %661 = vst.msk [vmem:[%s4 + $0x18] sm:$0xff] %vm67, %v398
  %662 = vst.msk [vmem:[%s4 + $0x20] sm:$0xff] %vm67, %v403
  %663 = vst.msk [vmem:[%s4 + $0x28] sm:$0xff] %vm67, %v406
  %664 = vst.msk [vmem:[%s4 + $0x30] sm:$0xff] %vm67, %v411
  %665 = vst.msk [vmem:[%s4 + $0x38] sm:$0xff] %vm67, %v414
  %666 = vst.msk [vmem:[%s4 + $0x40] sm:$0xff] %vm67, %v419
  %667 = vst.msk [vmem:[%s4 + $0x48] sm:$0xff] %vm67, %v422
  %668 = vst.msk [vmem:[%s4 + $0x50] sm:$0xff] %vm67, %v427
  %669 = vst.msk [vmem:[%s4 + $0x58] sm:$0xff] %vm67, %v430
  %670 = vst.msk [vmem:[%s4 + $0x60] sm:$0xff] %vm67, %v435
  %671 = vst.msk [vmem:[%s4 + $0x68] sm:$0xff] %vm67, %v438
  %672 = vst.msk [vmem:[%s4 + $0x70] sm:$0xff] %vm67, %v443
  %673 = vst.msk [vmem:[%s4 + $0x78] sm:$0xff] %vm67, %v446
  %674 = vst.msk [vmem:[%s4 + $0x80] sm:$0xff] %vm67, %v451
  %675 = vst.msk [vmem:[%s4 + $0x88] sm:$0xff] %vm67, %v454
  %676 = vst.msk [vmem:[%s4 + $0x90] sm:$0xff] %vm67, %v459
  %677 = vst.msk [vmem:[%s4 + $0x98] sm:$0xff] %vm67, %v462
  %678 = vst.msk [vmem:[%s4 + $0xa0] sm:$0xff] %vm67, %v467
  %679 = vst.msk [vmem:[%s4 + $0xa8] sm:$0xff] %vm67, %v470
  %680 = vst.msk [vmem:[%s4 + $0xb0] sm:$0xff] %vm67, %v475
  %681 = vst.msk [vmem:[%s4 + $0xb8] sm:$0xff] %vm67, %v478
  %682 = vst.msk [vmem:[%s4 + $0xc0] sm:$0xff] %vm67, %v483
  %683 = vst.msk [vmem:[%s4 + $0xc8] sm:$0xff] %vm67, %v486
  %684 = vst.msk [vmem:[%s4 + $0xd0] sm:$0xff] %vm67, %v491
  %685 = vst.msk [vmem:[%s4 + $0xd8] sm:$0xff] %vm67, %v494
  %686 = vst.msk [vmem:[%s4 + $0xe0] sm:$0xff] %vm67, %v499
  %687 = vst.msk [vmem:[%s4 + $0xe8] sm:$0xff] %vm67, %v502
  %688 = vst.msk [vmem:[%s4 + $0xf0] sm:$0xff] %vm67, %v507
  %689 = vst.msk [vmem:[%s4 + $0xf8] sm:$0xff] %vm67, %v510
  // Predicated region
  $region14: #{tpu_custom_call.1} parent=0 // pred_check
    _
  $region15: #{tpu_custom_call.1} parent=0 // pred_check_branch
    %691 = sbr.rel (0) target = $region17
  $region16: #{tpu_custom_call.1} parent=0 // pred_region
    _
  $region17: #{tpu_custom_call.1} parent=0 // pred_fallthru
    _
  // Predicated region
  $region18: #{tpu_custom_call.1} parent=0 // pred_check
    _
  $region19: #{tpu_custom_call.1} parent=0 // pred_check_branch
    %693 = sbr.rel (0) target = $region21
  $region20: #{tpu_custom_call.1} parent=0 // pred_region
    _
  $region21: #{tpu_custom_call.1} parent=0 // pred_fallthru
    _
  // Predicated region
  $region22: #{tpu_custom_call.1} parent=0 // pred_check
    _
  $region23: #{tpu_custom_call.1} parent=0 // pred_check_branch
    %695 = sbr.rel (0) target = $region25
  $region24: #{tpu_custom_call.1} parent=0 // pred_region
    _
  $region25: #{tpu_custom_call.1} parent=0 // pred_fallthru
    _
  // Predicated region
  $region26: #{tpu_custom_call.1} parent=0 // pred_check
    _
  $region27: #{tpu_custom_call.1} parent=0 // pred_check_branch
    %697 = sbr.rel (0) target = $region29
  $region28: #{tpu_custom_call.1} parent=0 // pred_region
    _
  $region29: #{tpu_custom_call.1} parent=0 // pred_fallthru
    _

</llo_original>
